<compile_context>
chip_gen: v7x
topology: tpu7x:2x2x1
jax: 0.10.0
libtpu: 0.0.40
codegen_flags: <defaults>
</compile_context>

<pallas_src>
import jax
import jax.numpy as jnp
from jax.experimental import pallas as pl
from jax.experimental.pallas import tpu as pltpu


def _round_up(n: int, m: int) -> int:
    return ((n + m - 1) // m) * m


def qnet_kernel(x_ref, w1_ref, b1_ref, w2_ref, b2_ref, w3_ref, b3_ref, o_ref):
    # x_ref: [tb, 11] natural row-major batch tile.  o_ref: [3, tb] lane-dense logits.
    # In-kernel transpose (XLU) so batch sits on the 128-wide lane axis for all matmuls
    # and the output store is a full-lane, unmasked vst.
    xt = x_ref[...].T                                                        # [11, tb]

    # h1 = ReLU(W1 @ xt + b1)                                                [25, tb]
    h1 = jnp.dot(w1_ref[...], xt, preferred_element_type=jnp.float32) + b1_ref[...]
    h1 = jnp.maximum(h1, 0.0)

    # h2 = ReLU(W2 @ h1 + b2)                                                [15, tb]
    h2 = jnp.dot(w2_ref[...], h1, preferred_element_type=jnp.float32) + b2_ref[...]
    h2 = jnp.maximum(h2, 0.0)

    # logits = W3 @ h2 + b3                                                  [3, tb]
    logits = jnp.dot(w3_ref[...], h2, preferred_element_type=jnp.float32) + b3_ref[...]
    o_ref[...] = logits.astype(o_ref.dtype)


def _pallas_logits(x, params, batch_tile):
    """x: [B, 11] float32 -> logits [B, 3] float32 via the Pallas kernel."""
    w1, b1, w2, b2, w3, b3 = (params["w1"], params["b1"], params["w2"],
                              params["b2"], params["w3"], params["b3"])
    B = x.shape[0]
    x = x.astype(jnp.float32)

    # Pad batch only to a multiple of 128 (lane granularity); pad waste < 128 rows.
    b_al = _round_up(B, 128)
    if b_al != B:
        x = jnp.pad(x, ((0, b_al - B), (0, 0)))

    batch_tile = max(128, _round_up(batch_tile, 128))
    tb = min(batch_tile, b_al)
    grid = (pl.cdiv(b_al, tb),)

    logits_t = pl.pallas_call(
        qnet_kernel,
        out_shape=jax.ShapeDtypeStruct((3, b_al), jnp.float32),
        grid=grid,
        in_specs=[
            pl.BlockSpec((tb, 11), lambda i: (i, 0)),   # x tile: streams over batch
            pl.BlockSpec((25, 11), lambda i: (0, 0)),   # W1 (resident across steps)
            pl.BlockSpec((25, 1), lambda i: (0, 0)),    # b1
            pl.BlockSpec((15, 25), lambda i: (0, 0)),   # W2
            pl.BlockSpec((15, 1), lambda i: (0, 0)),    # b2
            pl.BlockSpec((3, 15), lambda i: (0, 0)),    # W3
            pl.BlockSpec((3, 1), lambda i: (0, 0)),     # b3
        ],
        out_specs=pl.BlockSpec((3, tb), lambda i: (0, i)),   # lane-dense logits tile
        compiler_params=pltpu.CompilerParams(
            dimension_semantics=("parallel",),          # batch tiles are independent
            vmem_limit_bytes=64 * 1024 * 1024,
        ),
    )(x, w1, b1, w2, b2, w3, b3)

    return logits_t[:, :B].T                            # [B, 3]


def _xla_logits(x, params):
    """Plain XLA matmul chain (used for small batches where kernel launch dominates)."""
    h1 = jnp.maximum(params["w1"] @ x.astype(jnp.float32).T + params["b1"], 0.0)
    h2 = jnp.maximum(params["w2"] @ h1 + params["b2"], 0.0)
    return (params["w3"] @ h2 + params["b3"]).T         # [B, 3]


def qnetwork_forward(x, params, *, batch_tile: int = 16384,
                     min_pallas_batch: int = 4096, use_pallas=None):
    """Matches QNetwork.forward.

    x: [B, 11] (or [11] for a single state).  Returns softmax(dim=0) of the [B, 3]
    logits (for a 1-D input, softmax over the 3 actions, as PyTorch would).
    """
    single = (x.ndim == 1)
    if single:
        x = x[None, :]
    B = x.shape[0]

    if use_pallas is None:
        use_pallas = B >= min_pallas_batch
    logits = _pallas_logits(x, params, batch_tile) if use_pallas else _xla_logits(x, params)

    if single:
        return jax.nn.softmax(logits[0], axis=0)        # dim 0 of the 1-D [3] output
    # nn.Softmax(dim=0) on a [B, 3] tensor normalizes over the batch axis; it couples
    # every batch tile, so it runs here on the tiny [B, 3] logits.
    return jax.nn.softmax(logits, axis=0)


def init_params(key):
    """Deterministic synthetic init. Weights stored [out, in], biases [out, 1]."""
    ks = jax.random.split(key, 6)
    w1 = jax.random.normal(ks[0], (25, 11), jnp.float32) * 0.1
    b1 = jax.random.normal(ks[1], (25, 1), jnp.float32) * 0.1
    w2 = jax.random.normal(ks[2], (15, 25), jnp.float32) * 0.1
    b2 = jax.random.normal(ks[3], (15, 1), jnp.float32) * 0.1
    w3 = jax.random.normal(ks[4], (3, 15), jnp.float32) * 0.1
    b3 = jax.random.normal(ks[5], (3, 1), jnp.float32) * 0.1
    return dict(w1=w1, b1=b1, w2=w2, b2=b2, w3=w3, b3=b3)


def reference_forward(x, p):
    """Pure-JAX reference (same math, same [out, in] weight layout)."""
    h1 = jnp.maximum(p["w1"] @ x.T + p["b1"], 0.0)       # [25, B]
    h2 = jnp.maximum(p["w2"] @ h1 + p["b2"], 0.0)        # [15, B]
    logits = (p["w3"] @ h2 + p["b3"]).T                  # [B, 3]
    return jax.nn.softmax(logits, axis=0)                # dim=0, as nn.Softmax(dim=0)


if __name__ == "__main__":
    key = jax.random.PRNGKey(0)
    k_param, k_x = jax.random.split(key)
    params = init_params(k_param)

    # Small-shape checks that exercise: single tile (B=8), padded batch + 2-step grid
    # (B=200, tile 128) and an exact multi-step grid (B=384, tile 128).
    for B, bt in [(8, 16384), (200, 128), (384, 128)]:
        x = jax.random.normal(jax.random.fold_in(k_x, B), (B, 11), jnp.float32)
        out = qnetwork_forward(x, params, batch_tile=bt, use_pallas=True)
        out = jax.block_until_ready(out)
        ref = reference_forward(x, params)
        assert out.shape == (B, 3)
        assert jnp.allclose(out, ref, atol=1e-5, rtol=1e-5), f"mismatch vs reference (B={B})"
        # softmax over dim 0 -> each of the 3 output columns sums to 1
        assert jnp.allclose(jnp.sum(out, axis=0), jnp.ones((3,)), atol=1e-5)

    # Small-batch auto path (XLA fallback gate) agrees with the reference too.
    x_small = jax.random.normal(jax.random.fold_in(k_x, 1), (8, 11), jnp.float32)
    out_auto = jax.block_until_ready(qnetwork_forward(x_small, params))
    assert jnp.allclose(out_auto, reference_forward(x_small, params), atol=1e-5, rtol=1e-5)

    # 1-D state vector: softmax over the 3 actions (PyTorch dim=0 semantics for 1-D).
    x1 = jax.random.normal(jax.random.fold_in(k_x, 2), (11,), jnp.float32)
    out1 = jax.block_until_ready(qnetwork_forward(x1, params, use_pallas=True))
    ref1 = jax.nn.softmax(_xla_logits(x1[None, :], params)[0], axis=0)
    assert out1.shape == (3,)
    assert jnp.allclose(out1, ref1, atol=1e-5, rtol=1e-5)

    print("KERNEL_OK")
</pallas_src>

<mosaic_0001>
module attributes {stable_mosaic.version = 11 : i64} {
  func.func @qnet_kernel(%arg0: i32, %arg1: memref<128x11xf32, #tpu.memory_space<vmem>>, %arg2: memref<25x11xf32, #tpu.memory_space<vmem>>, %arg3: memref<25x1xf32, #tpu.memory_space<vmem>>, %arg4: memref<15x25xf32, #tpu.memory_space<vmem>>, %arg5: memref<15x1xf32, #tpu.memory_space<vmem>>, %arg6: memref<3x15xf32, #tpu.memory_space<vmem>>, %arg7: memref<3x1xf32, #tpu.memory_space<vmem>>, %arg8: memref<3x128xf32, #tpu.memory_space<vmem>>) attributes {dimension_semantics = [#tpu.dimension_semantics<parallel>], iteration_bounds = array<i64: 1>, scalar_prefetch = 0 : i64, scratch_operands = 0 : i64, tpu.core_type = #tpu.core_type<tc>, window_params = [{transform_indices = @transform_0, window_bounds = array<i64: 128, 11>}, {pipeline_mode = #tpu.pipeline_mode<synchronous>, transform_indices = @transform_1, window_bounds = array<i64: 25, 11>}, {pipeline_mode = #tpu.pipeline_mode<synchronous>, transform_indices = @transform_2, window_bounds = array<i64: 25, 1>}, {pipeline_mode = #tpu.pipeline_mode<synchronous>, transform_indices = @transform_3, window_bounds = array<i64: 15, 25>}, {pipeline_mode = #tpu.pipeline_mode<synchronous>, transform_indices = @transform_4, window_bounds = array<i64: 15, 1>}, {pipeline_mode = #tpu.pipeline_mode<synchronous>, transform_indices = @transform_5, window_bounds = array<i64: 3, 15>}, {pipeline_mode = #tpu.pipeline_mode<synchronous>, transform_indices = @transform_6, window_bounds = array<i64: 3, 1>}, {transform_indices = @transform_7, window_bounds = array<i64: 3, 128>}]} {
    %c0 = arith.constant 0 : index
    %c0_0 = arith.constant 0 : index
    %0 = vector.load %arg1[%c0, %c0_0] : memref<128x11xf32, #tpu.memory_space<vmem>>, vector<128x11xf32>
    %1 = tpu.transpose %0, [1, 0] : vector<128x11xf32> -> vector<11x128xf32>
    %c0_1 = arith.constant 0 : index
    %c0_2 = arith.constant 0 : index
    %2 = vector.load %arg2[%c0_1, %c0_2] : memref<25x11xf32, #tpu.memory_space<vmem>>, vector<25x11xf32>
    %cst = arith.constant dense<0.000000e+00> : vector<25x128xf32>
    %3 = tpu.matmul %2, %1, %cst {dimension_numbers = #tpu.dot_dimension_numbers<[1], [0], [0], [1], [0, 0, 1, 1], [], []>} : vector<25x11xf32>, vector<11x128xf32>, vector<25x128xf32> -> vector<25x128xf32>
    %c0_3 = arith.constant 0 : index
    %c0_4 = arith.constant 0 : index
    %4 = vector.load %arg3[%c0_3, %c0_4] : memref<25x1xf32, #tpu.memory_space<vmem>>, vector<25x1xf32>
    %5 = vector.broadcast %4 : vector<25x1xf32> to vector<25x128xf32>
    %6 = arith.addf %3, %5 : vector<25x128xf32>
    %cst_5 = arith.constant 0.000000e+00 : f32
    %7 = vector.broadcast %cst_5 : f32 to vector<25x128xf32>
    %8 = arith.maximumf %6, %7 : vector<25x128xf32>
    %c0_6 = arith.constant 0 : index
    %c0_7 = arith.constant 0 : index
    %9 = vector.load %arg4[%c0_6, %c0_7] : memref<15x25xf32, #tpu.memory_space<vmem>>, vector<15x25xf32>
    %cst_8 = arith.constant dense<0.000000e+00> : vector<15x128xf32>
    %10 = tpu.matmul %9, %8, %cst_8 {dimension_numbers = #tpu.dot_dimension_numbers<[1], [0], [0], [1], [0, 0, 1, 1], [], []>} : vector<15x25xf32>, vector<25x128xf32>, vector<15x128xf32> -> vector<15x128xf32>
    %c0_9 = arith.constant 0 : index
    %c0_10 = arith.constant 0 : index
    %11 = vector.load %arg5[%c0_9, %c0_10] : memref<15x1xf32, #tpu.memory_space<vmem>>, vector<15x1xf32>
    %12 = vector.broadcast %11 : vector<15x1xf32> to vector<15x128xf32>
    %13 = arith.addf %10, %12 : vector<15x128xf32>
    %cst_11 = arith.constant 0.000000e+00 : f32
    %14 = vector.broadcast %cst_11 : f32 to vector<15x128xf32>
    %15 = arith.maximumf %13, %14 : vector<15x128xf32>
    %c0_12 = arith.constant 0 : index
    %c0_13 = arith.constant 0 : index
    %16 = vector.load %arg6[%c0_12, %c0_13] : memref<3x15xf32, #tpu.memory_space<vmem>>, vector<3x15xf32>
    %cst_14 = arith.constant dense<0.000000e+00> : vector<3x128xf32>
    %17 = tpu.matmul %16, %15, %cst_14 {dimension_numbers = #tpu.dot_dimension_numbers<[1], [0], [0], [1], [0, 0, 1, 1], [], []>} : vector<3x15xf32>, vector<15x128xf32>, vector<3x128xf32> -> vector<3x128xf32>
    %c0_15 = arith.constant 0 : index
    %c0_16 = arith.constant 0 : index
    %18 = vector.load %arg7[%c0_15, %c0_16] : memref<3x1xf32, #tpu.memory_space<vmem>>, vector<3x1xf32>
    %19 = vector.broadcast %18 : vector<3x1xf32> to vector<3x128xf32>
    %20 = arith.addf %17, %19 : vector<3x128xf32>
    %c0_17 = arith.constant 0 : index
    %c0_18 = arith.constant 0 : index
    %21 = vector.load %arg8[%c0_17, %c0_18] : memref<3x128xf32, #tpu.memory_space<vmem>>, vector<3x128xf32>
    tpu.vector_store %arg8[%c0_17, %c0_18], %20 {strides = array<i32>} : memref<3x128xf32, #tpu.memory_space<vmem>>, vector<3x128xf32>,
    return
  }
  func.func @transform_0(%arg0: i32) -> (i32, i32) {
    %c0_i32 = arith.constant 0 : i32
    %c0_i32_0 = arith.constant 0 : i32
    return %arg0, %c0_i32 : i32, i32
  }
  func.func @transform_1(%arg0: i32) -> (i32, i32) {
    %c0_i32 = arith.constant 0 : i32
    %c0_i32_0 = arith.constant 0 : i32
    %c0_i32_1 = arith.constant 0 : i32
    return %c0_i32, %c0_i32_0 : i32, i32
  }
  func.func @transform_2(%arg0: i32) -> (i32, i32) {
    %c0_i32 = arith.constant 0 : i32
    %c0_i32_0 = arith.constant 0 : i32
    %c0_i32_1 = arith.constant 0 : i32
    return %c0_i32, %c0_i32_0 : i32, i32
  }
  func.func @transform_3(%arg0: i32) -> (i32, i32) {
    %c0_i32 = arith.constant 0 : i32
    %c0_i32_0 = arith.constant 0 : i32
    %c0_i32_1 = arith.constant 0 : i32
    return %c0_i32, %c0_i32_0 : i32, i32
  }
  func.func @transform_4(%arg0: i32) -> (i32, i32) {
    %c0_i32 = arith.constant 0 : i32
    %c0_i32_0 = arith.constant 0 : i32
    %c0_i32_1 = arith.constant 0 : i32
    return %c0_i32, %c0_i32_0 : i32, i32
  }
  func.func @transform_5(%arg0: i32) -> (i32, i32) {
    %c0_i32 = arith.constant 0 : i32
    %c0_i32_0 = arith.constant 0 : i32
    %c0_i32_1 = arith.constant 0 : i32
    return %c0_i32, %c0_i32_0 : i32, i32
  }
  func.func @transform_6(%arg0: i32) -> (i32, i32) {
    %c0_i32 = arith.constant 0 : i32
    %c0_i32_0 = arith.constant 0 : i32
    %c0_i32_1 = arith.constant 0 : i32
    return %c0_i32, %c0_i32_0 : i32, i32
  }
  func.func @transform_7(%arg0: i32) -> (i32, i32) {
    %c0_i32 = arith.constant 0 : i32
    %c0_i32_0 = arith.constant 0 : i32
    return %c0_i32, %arg0 : i32, i32
  }
}

</mosaic_0001>

<llo_original>
// kernel: tpu_custom_call.1
$region0: #{tpu_custom_call.1}
  #allocation0 [shape = 'u32[]', space=smem, size = 0x4, offset = 0x4, fixed_abs, tag = 'smem constant byte address 0x4 - core index']
  #allocation1 [shape = 'u32[144,128]{1,0:T(1,128)}', space=vmem, size = 0x12000, scoped, tag = 'internal scratch']
  %s0 = inlined_call_operand.hbm [shape: f32[128,11], index: 0, kind: input, shape index: {}]
  %s1 = inlined_call_operand.hbm [shape: f32[25,11], index: 1, kind: input, shape index: {}]
  %s2 = inlined_call_operand.hbm [shape: f32[25,1], index: 2, kind: input, shape index: {}]
  %s3 = inlined_call_operand.hbm [shape: f32[15,25], index: 3, kind: input, shape index: {}]
  %s4 = inlined_call_operand.hbm [shape: f32[15,1], index: 4, kind: input, shape index: {}]
  %s5 = inlined_call_operand.hbm [shape: f32[3,15], index: 5, kind: input, shape index: {}]
  %s6 = inlined_call_operand.hbm [shape: f32[3,1], index: 6, kind: input, shape index: {}]
  %s7 = inlined_call_operand.hbm [shape: f32[3,128], index: 7, kind: output, shape index: {}]
  %s8 = sld [smem:[#allocation0]]
  $region66: #{tpu_custom_call.1} parent=0
    _
  %s10 = ssub.s32 1, %s8
  %s11 = scalar_select 0, %s10, %s8
  $region1: #{tpu_custom_call.1} parent=0
    #allocation2 [shape = 'u8[65536]{0}', space=vmem, size = 0x10000, scoped, tag = 'input window, operand 0, single buffered']
    #allocation3 [shape = 's32[1]{0}', space=sflag, size = 0x4, scoped, tag = 'scoped memory for tpu_custom_call.1']
    #allocation4 [shape = 's32[1]{0}', space=sflag, size = 0x4, scoped, tag = 'scoped memory for tpu_custom_call.1']
    #allocation5 [shape = 'u8[16384]{0}', space=vmem, size = 0x4000, scoped, tag = 'input window, operand 1, single buffered']
    #allocation6 [shape = 's32[1]{0}', space=sflag, size = 0x4, scoped, tag = 'scoped memory for tpu_custom_call.1']
    #allocation7 [shape = 'u8[16384]{0}', space=vmem, size = 0x4000, scoped, tag = 'input window, operand 2, single buffered']
    #allocation8 [shape = 'u8[8192]{0}', space=vmem, size = 0x2000, scoped, tag = 'input window, operand 3, single buffered']
    #allocation9 [shape = 's32[1]{0}', space=sflag, size = 0x4, scoped, tag = 'scoped memory for tpu_custom_call.1']
    #allocation10 [shape = 'u8[8192]{0}', space=vmem, size = 0x2000, scoped, tag = 'input window, operand 4, single buffered']
    #allocation11 [shape = 'u8[2048]{0}', space=vmem, size = 0x800, scoped, tag = 'input window, operand 5, single buffered']
    #allocation12 [shape = 's32[1]{0}', space=sflag, size = 0x4, scoped, tag = 'scoped memory for tpu_custom_call.1']
    #allocation13 [shape = 'u8[2048]{0}', space=vmem, size = 0x800, scoped, tag = 'input window, operand 6, single buffered']
    #allocation14 [shape = 'u8[2048]{0}', space=vmem, size = 0x800, scoped, tag = 'output window, operand 0, single buffered']
    %12 = vsyncpa [#allocation3], 0
    %13 = vsyncpa [#allocation6], 0
    %14 = vsyncpa [#allocation9], 0
    %15 = vsyncpa [#allocation12], 0
    %16 = vsyncpa [#allocation4], 0
    // Predicated region
    $region2: #{tpu_custom_call.1} parent=1 // pred_check
      _
    $region3: #{tpu_custom_call.1} parent=1 // pred_check_branch
      %18 = sbr.rel (0) target = $region5
    $region4: #{tpu_custom_call.1} parent=1 // pred_region
      %s20 = ssub.s32 2048, 2048
      %21 = vsyncadd [#allocation3], %s20
      %s22 = sshll.u32 [#allocation2], 4
      %s23 = int_to_ptr.vmem [resolvable:$true] %s22
      %28 = dma.hbm_to_vmem [thread:$0]  %s0, 2048, %s23, [#allocation3], 128, 128, 8
    $region5: #{tpu_custom_call.1} parent=1 // pred_fallthru
      _
    // Predicated region
    $region6: #{tpu_custom_call.1} parent=1 // pred_check
      _
    $region7: #{tpu_custom_call.1} parent=1 // pred_check_branch
      %30 = sbr.rel (0) target = $region9
    $region8: #{tpu_custom_call.1} parent=1 // pred_region
      %s32 = ssub.s32 512, 512
      %33 = vsyncadd [#allocation6], %s32
      %s34 = sshll.u32 [#allocation5], 4
      %s35 = int_to_ptr.vmem [resolvable:$true] %s34
      %40 = dma.hbm_to_vmem [thread:$0]  %s1, 512, %s35, [#allocation6], 128, 128, 8
    $region9: #{tpu_custom_call.1} parent=1 // pred_fallthru
      _
    // Predicated region
    $region10: #{tpu_custom_call.1} parent=1 // pred_check
      _
    $region11: #{tpu_custom_call.1} parent=1 // pred_check_branch
      %42 = sbr.rel (0) target = $region13
    $region12: #{tpu_custom_call.1} parent=1 // pred_region
      %s44 = ssub.s32 512, 512
      %45 = vsyncadd [#allocation6], %s44
      %s46 = sshll.u32 [#allocation7], 4
      %s47 = int_to_ptr.vmem [resolvable:$true] %s46
      %52 = dma.hbm_to_vmem [thread:$0]  %s2, 512, %s47, [#allocation6], 128, 128, 8
    $region13: #{tpu_custom_call.1} parent=1 // pred_fallthru
      _
    // Predicated region
    $region14: #{tpu_custom_call.1} parent=1 // pred_check
      _
    $region15: #{tpu_custom_call.1} parent=1 // pred_check_branch
      %54 = sbr.rel (0) target = $region17
    $region16: #{tpu_custom_call.1} parent=1 // pred_region
      %s56 = ssub.s32 256, 256
      %57 = vsyncadd [#allocation9], %s56
      %s58 = sshll.u32 [#allocation8], 4
      %s59 = int_to_ptr.vmem [resolvable:$true] %s58
      %64 = dma.hbm_to_vmem [thread:$0]  %s3, 256, %s59, [#allocation9], 128, 128, 8
    $region17: #{tpu_custom_call.1} parent=1 // pred_fallthru
      _
    // Predicated region
    $region18: #{tpu_custom_call.1} parent=1 // pred_check
      _
    $region19: #{tpu_custom_call.1} parent=1 // pred_check_branch
      %66 = sbr.rel (0) target = $region21
    $region20: #{tpu_custom_call.1} parent=1 // pred_region
      %s68 = ssub.s32 256, 256
      %69 = vsyncadd [#allocation9], %s68
      %s70 = sshll.u32 [#allocation10], 4
      %s71 = int_to_ptr.vmem [resolvable:$true] %s70
      %76 = dma.hbm_to_vmem [thread:$0]  %s4, 256, %s71, [#allocation9], 128, 128, 8
    $region21: #{tpu_custom_call.1} parent=1 // pred_fallthru
      _
    // Predicated region
    $region22: #{tpu_custom_call.1} parent=1 // pred_check
      _
    $region23: #{tpu_custom_call.1} parent=1 // pred_check_branch
      %78 = sbr.rel (0) target = $region25
    $region24: #{tpu_custom_call.1} parent=1 // pred_region
      %s80 = ssub.s32 64, 64
      %81 = vsyncadd [#allocation12], %s80
      %s83 = sshll.u32 [#allocation11], 4
      %s84 = int_to_ptr.vmem [resolvable:$true] %s83
      %86 = dma.hbm_to_vmem [thread:$0]  %s5, 64, %s84, [#allocation12]
    $region25: #{tpu_custom_call.1} parent=1 // pred_fallthru
      _
    // Predicated region
    $region26: #{tpu_custom_call.1} parent=1 // pred_check
      _
    $region27: #{tpu_custom_call.1} parent=1 // pred_check_branch
      %88 = sbr.rel (0) target = $region29
    $region28: #{tpu_custom_call.1} parent=1 // pred_region
      %s90 = ssub.s32 64, 64
      %91 = vsyncadd [#allocation12], %s90
      %s93 = sshll.u32 [#allocation13], 4
      %s94 = int_to_ptr.vmem [resolvable:$true] %s93
      %96 = dma.hbm_to_vmem [thread:$0]  %s6, 64, %s94, [#allocation12]
    $region29: #{tpu_custom_call.1} parent=1 // pred_fallthru
      _
    // Predicated region
    $region30: #{tpu_custom_call.1} parent=1 // pred_check
      _
    $region31: #{tpu_custom_call.1} parent=1 // pred_check_branch
      %98 = sbr.rel (0) target = $region33
    $region32: #{tpu_custom_call.1} parent=1 // pred_region
      %99 = dma.done [#allocation3], 2048
    $region33: #{tpu_custom_call.1} parent=1 // pred_fallthru
      _
    // Predicated region
    $region34: #{tpu_custom_call.1} parent=1 // pred_check
      _
    $region35: #{tpu_custom_call.1} parent=1 // pred_check_branch
      %101 = sbr.rel (0) target = $region37
    $region36: #{tpu_custom_call.1} parent=1 // pred_region
      %102 = dma.done [#allocation6], 512
    $region37: #{tpu_custom_call.1} parent=1 // pred_fallthru
      _
    // Predicated region
    $region38: #{tpu_custom_call.1} parent=1 // pred_check
      _
    $region39: #{tpu_custom_call.1} parent=1 // pred_check_branch
      %104 = sbr.rel (0) target = $region41
    $region40: #{tpu_custom_call.1} parent=1 // pred_region
      %105 = dma.done [#allocation6], 512
    $region41: #{tpu_custom_call.1} parent=1 // pred_fallthru
      _
    // Predicated region
    $region42: #{tpu_custom_call.1} parent=1 // pred_check
      _
    $region43: #{tpu_custom_call.1} parent=1 // pred_check_branch
      %107 = sbr.rel (0) target = $region45
    $region44: #{tpu_custom_call.1} parent=1 // pred_region
      %108 = dma.done [#allocation9], 256
    $region45: #{tpu_custom_call.1} parent=1 // pred_fallthru
      _
    // Predicated region
    $region46: #{tpu_custom_call.1} parent=1 // pred_check
      _
    $region47: #{tpu_custom_call.1} parent=1 // pred_check_branch
      %110 = sbr.rel (0) target = $region49
    $region48: #{tpu_custom_call.1} parent=1 // pred_region
      %111 = dma.done [#allocation9], 256
    $region49: #{tpu_custom_call.1} parent=1 // pred_fallthru
      _
    // Predicated region
    $region50: #{tpu_custom_call.1} parent=1 // pred_check
      _
    $region51: #{tpu_custom_call.1} parent=1 // pred_check_branch
      %113 = sbr.rel (0) target = $region53
    $region52: #{tpu_custom_call.1} parent=1 // pred_region
      %114 = dma.done [#allocation12], 64
    $region53: #{tpu_custom_call.1} parent=1 // pred_fallthru
      _
    // Predicated region
    $region54: #{tpu_custom_call.1} parent=1 // pred_check
      _
    $region55: #{tpu_custom_call.1} parent=1 // pred_check_branch
      %116 = sbr.rel (0) target = $region57
    $region56: #{tpu_custom_call.1} parent=1 // pred_region
      %117 = dma.done [#allocation12], 64
    $region57: #{tpu_custom_call.1} parent=1 // pred_fallthru
      _
    %v118 = vld [vmem:[#allocation2] sm:$0xff]
    %v119 = vld [vmem:[#allocation2 + $0x8] sm:$0xff]
    %v120 = vld [vmem:[#allocation2 + $0x10] sm:$0xff]
    %v121 = vld [vmem:[#allocation2 + $0x18] sm:$0xff]
    %v122 = vld [vmem:[#allocation2 + $0x20] sm:$0xff]
    %v123 = vld [vmem:[#allocation2 + $0x28] sm:$0xff]
    %v124 = vld [vmem:[#allocation2 + $0x30] sm:$0xff]
    %v125 = vld [vmem:[#allocation2 + $0x38] sm:$0xff]
    %v126 = vld [vmem:[#allocation2 + $0x40] sm:$0xff]
    %v127 = vld [vmem:[#allocation2 + $0x48] sm:$0xff]
    %v128 = vld [vmem:[#allocation2 + $0x50] sm:$0xff]
    %v129 = vld [vmem:[#allocation2 + $0x58] sm:$0xff]
    %v130 = vld [vmem:[#allocation2 + $0x60] sm:$0xff]
    %v131 = vld [vmem:[#allocation2 + $0x68] sm:$0xff]
    %v132 = vld [vmem:[#allocation2 + $0x70] sm:$0xff]
    %v133 = vld [vmem:[#allocation2 + $0x78] sm:$0xff]
    %v134 = vld [vmem:[#allocation5] sm:$0xff]
    %v135 = vld [vmem:[#allocation5 + $0x8] sm:$0xff]
    %v136 = vld [vmem:[#allocation5 + $0x10] sm:$0xff]
    %v137 = vld [vmem:[#allocation5 + $0x18] sm:$0x1]
    %v138 = vld [vmem:[#allocation7] sm:$0xff]
    %v139 = vld [vmem:[#allocation7 + $0x8] sm:$0xff]
    %v140 = vld [vmem:[#allocation7 + $0x10] sm:$0xff]
    %v141 = vld [vmem:[#allocation7 + $0x18] sm:$0x1]
    %143 = vset.pattern.permute.xlu0 0
    %144 = vperm.xlu0 %143, %v138
    %v145 = vpop.permute.xlu0 %144
    %148 = vset.pattern.permute.xlu0 0
    %149 = vperm.xlu0 %148, %v139
    %v150 = vpop.permute.xlu0 %149
    %153 = vset.pattern.permute.xlu0 0
    %154 = vperm.xlu0 %153, %v140
    %v155 = vpop.permute.xlu0 %154
    %158 = vset.pattern.permute.xlu0 0
    %159 = vperm.xlu0 %158, %v141
    %v160 = vpop.permute.xlu0 %159
    %vm162 = vcmask 89088
    %v164 = vsel %vm162, %v134, 0
    %v167 = vsel %vm162, %v135, 0
    %v170 = vsel %vm162, %v136, 0
    %v173 = vsel %vm162, %v137, 0
    %v176 = vsel %vm162, %v118, 0
    %v179 = vsel %vm162, %v119, 0
    %v182 = vsel %vm162, %v120, 0
    %v185 = vsel %vm162, %v121, 0
    %v188 = vsel %vm162, %v122, 0
    %v191 = vsel %vm162, %v123, 0
    %v194 = vsel %vm162, %v124, 0
    %v197 = vsel %vm162, %v125, 0
    %v200 = vsel %vm162, %v126, 0
    %v203 = vsel %vm162, %v127, 0
    %v206 = vsel %vm162, %v128, 0
    %v209 = vsel %vm162, %v129, 0
    %v212 = vsel %vm162, %v130, 0
    %v215 = vsel %vm162, %v131, 0
    %v218 = vsel %vm162, %v132, 0
    %v221 = vsel %vm162, %v133, 0
    %223 = vmatprep.subr.mxu0 0.0
    %224 = vmatpush1.xpose.msra.mxu0 %v176
    %225 = vmatprep.subr.mxu0 0.0
    %226 = vmatpush1.xpose.msra.mxu0 %v179
    %227 = vmatprep.subr.mxu0 0.0
    %228 = vmatpush1.xpose.msra.mxu0 %v182
    %229 = vmatprep.subr.mxu0 0.0
    %230 = vmatpush1.xpose.msra.mxu0 %v185
    %231 = vmatprep.subr.mxu0 0.0
    %232 = vmatpush1.xpose.msra.mxu0 %v188
    %233 = vmatprep.subr.mxu0 0.0
    %234 = vmatpush1.xpose.msra.mxu0 %v191
    %235 = vmatprep.subr.mxu0 0.0
    %236 = vmatpush1.xpose.msra.mxu0 %v194
    %237 = vmatprep.subr.mxu0 0.0
    %238 = vmatpush1.xpose.msra.mxu0 %v197
    %239 = vmatprep.subr.mxu0 0.0
    %240 = vmatpush1.xpose.msra.mxu0 %v200
    %241 = vmatprep.subr.mxu0 0.0
    %242 = vmatpush1.xpose.msra.mxu0 %v203
    %243 = vmatprep.subr.mxu0 0.0
    %244 = vmatpush1.xpose.msra.mxu0 %v206
    %245 = vmatprep.subr.mxu0 0.0
    %246 = vmatpush1.xpose.msra.mxu0 %v209
    %247 = vmatprep.subr.mxu0 0.0
    %248 = vmatpush1.xpose.msra.mxu0 %v212
    %249 = vmatprep.subr.mxu0 0.0
    %250 = vmatpush1.xpose.msra.mxu0 %v215
    %251 = vmatprep.subr.mxu0 0.0
    %252 = vmatpush1.xpose.msra.mxu0 %v218
    %253 = vmatprep.subr.mxu0 0.0
    %254 = vmatpush1.xpose.msra.mxu0 %v221
    %255 = vmatprep.subr.mxu0 0.0
    %256 = vmatpush1.xpose.msra.mxu0 0.0
    %257 = vmatprep.subr.mxu0 0.0
    %258 = vmatpush1.xpose.msra.mxu0 0.0
    %259 = vmatprep.subr.mxu0 0.0
    %260 = vmatpush1.xpose.msra.mxu0 0.0
    %261 = vmatprep.subr.mxu0 0.0
    %262 = vmatpush1.xpose.msra.mxu0 0.0
    %263 = vmatprep.subr.mxu0 0.0
    %264 = vmatpush1.xpose.msra.mxu0 0.0
    %265 = vmatprep.subr.mxu0 0.0
    %266 = vmatpush1.xpose.msra.mxu0 0.0
    %267 = vmatprep.subr.mxu0 0.0
    %268 = vmatpush1.xpose.msra.mxu0 0.0
    %269 = vmatprep.subr.mxu0 0.0
    %270 = vmatpush1.xpose.msra.mxu0 0.0
    %271 = vmatprep.subr.mxu0 0.0
    %272 = vmatpush1.xpose.msra.mxu0 0.0
    %273 = vmatprep.subr.mxu0 0.0
    %274 = vmatpush1.xpose.msra.mxu0 0.0
    %275 = vmatprep.subr.mxu0 0.0
    %276 = vmatpush1.xpose.msra.mxu0 0.0
    %277 = vmatprep.subr.mxu0 0.0
    %278 = vmatpush1.xpose.msra.mxu0 0.0
    %279 = vmatprep.subr.mxu0 0.0
    %280 = vmatpush1.xpose.msra.mxu0 0.0
    %281 = vmatprep.subr.mxu0 0.0
    %282 = vmatpush1.xpose.msra.mxu0 0.0
    %283 = vmatprep.subr.mxu0 0.0
    %284 = vmatpush1.xpose.msra.mxu0 0.0
    %285 = vmatprep.subr.mxu0 0.0
    %286 = vmatpush1.xpose.msra.mxu0 0.0
    %287 = vmatprep.mubr.f32.mxu0 0.0
    %288 = vmatmul.mubr.f32.gmra.mrb[0].mxu0 %v164
    %v289 = vpop.f32.mrb[0].mxu0
    %v290 = vadd.f32 %v145, %v289
    %v291 = vpop.f32.mrb[0].mxu0
    %292 = vmatprep.mubr.f32.mxu0 0.0
    %293 = vmatmul.mubr.f32.gmra.mrb[0].mxu0 %v167
    %v294 = vpop.f32.mrb[0].mxu0
    %v295 = vadd.f32 %v150, %v294
    %v296 = vpop.f32.mrb[0].mxu0
    %297 = vmatprep.mubr.f32.mxu0 0.0
    %298 = vmatmul.mubr.f32.gmra.mrb[0].mxu0 %v170
    %v299 = vpop.f32.mrb[0].mxu0
    %v300 = vadd.f32 %v155, %v299
    %v301 = vpop.f32.mrb[0].mxu0
    %302 = vmatprep.mubr.f32.mxu0 0.0
    %303 = vmatmul.mubr.f32.gmra.mrb[0].mxu0 %v173
    %v304 = vpop.f32.mrb[0].mxu0
    %v305 = vadd.f32 %v160, %v304
    %v306 = vpop.f32.mrb[0].mxu0
    %307 = vdwg.mxu0
    %v308 = vmax.f32 %v290, 0.0
    %v309 = vmax.f32 %v295, 0.0
    %v310 = vmax.f32 %v300, 0.0
    %v311 = vmax.f32 %v305, 0.0
    %v312 = vld [vmem:[#allocation8] sm:$0xff]
    %v313 = vld [vmem:[#allocation8 + $0x8] sm:$0x7f]
    %v314 = vld [vmem:[#allocation10] sm:$0xff]
    %v315 = vld [vmem:[#allocation10 + $0x8] sm:$0x7f]
    %317 = vset.pattern.permute.xlu0 0
    %318 = vperm.xlu0 %317, %v314
    %v319 = vpop.permute.xlu0 %318
    %322 = vset.pattern.permute.xlu0 0
    %323 = vperm.xlu0 %322, %v315
    %v324 = vpop.permute.xlu0 %323
    %vm326 = vcmask 203776
    %v328 = vsel %vm326, %v312, 0
    %v331 = vsel %vm326, %v313, 0
    %vm333 = vcmask 1040384
    %v335 = vsel %vm333, %v311, 0
    %337 = vmatprep.subr.mxu0 0.0
    %338 = vmatpush1.msra.mxu0 %v308
    %339 = vmatprep.subr.mxu0 0.0
    %340 = vmatpush1.msra.mxu0 %v309
    %341 = vmatprep.subr.mxu0 0.0
    %342 = vmatpush1.msra.mxu0 %v310
    %343 = vmatprep.subr.mxu0 0.0
    %344 = vmatpush1.msra.mxu0 %v335
    %345 = vmatprep.subr.mxu0 0.0
    %346 = vmatpush1.msra.mxu0 0.0
    %347 = vmatprep.subr.mxu0 0.0
    %348 = vmatpush1.msra.mxu0 0.0
    %349 = vmatprep.subr.mxu0 0.0
    %350 = vmatpush1.msra.mxu0 0.0
    %351 = vmatprep.subr.mxu0 0.0
    %352 = vmatpush1.msra.mxu0 0.0
    %353 = vmatprep.subr.mxu0 0.0
    %354 = vmatpush1.msra.mxu0 0.0
    %355 = vmatprep.subr.mxu0 0.0
    %356 = vmatpush1.msra.mxu0 0.0
    %357 = vmatprep.subr.mxu0 0.0
    %358 = vmatpush1.msra.mxu0 0.0
    %359 = vmatprep.subr.mxu0 0.0
    %360 = vmatpush1.msra.mxu0 0.0
    %361 = vmatprep.subr.mxu0 0.0
    %362 = vmatpush1.msra.mxu0 0.0
    %363 = vmatprep.subr.mxu0 0.0
    %364 = vmatpush1.msra.mxu0 0.0
    %365 = vmatprep.subr.mxu0 0.0
    %366 = vmatpush1.msra.mxu0 0.0
    %367 = vmatprep.subr.mxu0 0.0
    %368 = vmatpush1.msra.mxu0 0.0
    %369 = vmatprep.subr.mxu0 0.0
    %370 = vmatpush1.msra.mxu0 0.0
    %371 = vmatprep.subr.mxu0 0.0
    %372 = vmatpush1.msra.mxu0 0.0
    %373 = vmatprep.subr.mxu0 0.0
    %374 = vmatpush1.msra.mxu0 0.0
    %375 = vmatprep.subr.mxu0 0.0
    %376 = vmatpush1.msra.mxu0 0.0
    %377 = vmatprep.subr.mxu0 0.0
    %378 = vmatpush1.msra.mxu0 0.0
    %379 = vmatprep.subr.mxu0 0.0
    %380 = vmatpush1.msra.mxu0 0.0
    %381 = vmatprep.subr.mxu0 0.0
    %382 = vmatpush1.msra.mxu0 0.0
    %383 = vmatprep.subr.mxu0 0.0
    %384 = vmatpush1.msra.mxu0 0.0
    %385 = vmatprep.subr.mxu0 0.0
    %386 = vmatpush1.msra.mxu0 0.0
    %387 = vmatprep.subr.mxu0 0.0
    %388 = vmatpush1.msra.mxu0 0.0
    %389 = vmatprep.subr.mxu0 0.0
    %390 = vmatpush1.msra.mxu0 0.0
    %391 = vmatprep.subr.mxu0 0.0
    %392 = vmatpush1.msra.mxu0 0.0
    %393 = vmatprep.subr.mxu0 0.0
    %394 = vmatpush1.msra.mxu0 0.0
    %395 = vmatprep.subr.mxu0 0.0
    %396 = vmatpush1.msra.mxu0 0.0
    %397 = vmatprep.subr.mxu0 0.0
    %398 = vmatpush1.msra.mxu0 0.0
    %399 = vmatprep.subr.mxu0 0.0
    %400 = vmatpush1.msra.mxu0 0.0
    %401 = vmatprep.mubr.f32.mxu0 0.0
    %402 = vmatmul.mubr.f32.gmra.mrb[0].mxu0 %v328
    %v403 = vpop.f32.mrb[0].mxu0
    %v404 = vadd.f32 %v319, %v403
    %v405 = vpop.f32.mrb[0].mxu0
    %406 = vmatprep.mubr.f32.mxu0 0.0
    %407 = vmatmul.mubr.f32.gmra.mrb[0].mxu0 %v331
    %v408 = vpop.f32.mrb[0].mxu0
    %v409 = vadd.f32 %v324, %v408
    %v410 = vpop.f32.mrb[0].mxu0
    %411 = vdwg.mxu0
    %v412 = vmax.f32 %v404, 0.0
    %v413 = vmax.f32 %v409, 0.0
    %v414 = vld [vmem:[#allocation11] sm:$0x7]
    %v415 = vld [vmem:[#allocation13] sm:$0x7]
    %417 = vset.pattern.permute.xlu0 0
    %418 = vperm.xlu0 %417, %v415
    %v419 = vpop.permute.xlu0 %418
    %vm421 = vcmask 121856
    %v423 = vsel %vm421, %v414, 0
    %vm425 = vcmask 1046528
    %v427 = vsel %vm425, %v413, 0
    %429 = vmatprep.subr.mxu0 0.0
    %430 = vmatpush1.msra.mxu0 %v412
    %431 = vmatprep.subr.mxu0 0.0
    %432 = vmatpush1.msra.mxu0 %v427
    %433 = vmatprep.subr.mxu0 0.0
    %434 = vmatpush1.msra.mxu0 0.0
    %435 = vmatprep.subr.mxu0 0.0
    %436 = vmatpush1.msra.mxu0 0.0
    %437 = vmatprep.subr.mxu0 0.0
    %438 = vmatpush1.msra.mxu0 0.0
    %439 = vmatprep.subr.mxu0 0.0
    %440 = vmatpush1.msra.mxu0 0.0
    %441 = vmatprep.subr.mxu0 0.0
    %442 = vmatpush1.msra.mxu0 0.0
    %443 = vmatprep.subr.mxu0 0.0
    %444 = vmatpush1.msra.mxu0 0.0
    %445 = vmatprep.subr.mxu0 0.0
    %446 = vmatpush1.msra.mxu0 0.0
    %447 = vmatprep.subr.mxu0 0.0
    %448 = vmatpush1.msra.mxu0 0.0
    %449 = vmatprep.subr.mxu0 0.0
    %450 = vmatpush1.msra.mxu0 0.0
    %451 = vmatprep.subr.mxu0 0.0
    %452 = vmatpush1.msra.mxu0 0.0
    %453 = vmatprep.subr.mxu0 0.0
    %454 = vmatpush1.msra.mxu0 0.0
    %455 = vmatprep.subr.mxu0 0.0
    %456 = vmatpush1.msra.mxu0 0.0
    %457 = vmatprep.subr.mxu0 0.0
    %458 = vmatpush1.msra.mxu0 0.0
    %459 = vmatprep.subr.mxu0 0.0
    %460 = vmatpush1.msra.mxu0 0.0
    %461 = vmatprep.subr.mxu0 0.0
    %462 = vmatpush1.msra.mxu0 0.0
    %463 = vmatprep.subr.mxu0 0.0
    %464 = vmatpush1.msra.mxu0 0.0
    %465 = vmatprep.subr.mxu0 0.0
    %466 = vmatpush1.msra.mxu0 0.0
    %467 = vmatprep.subr.mxu0 0.0
    %468 = vmatpush1.msra.mxu0 0.0
    %469 = vmatprep.subr.mxu0 0.0
    %470 = vmatpush1.msra.mxu0 0.0
    %471 = vmatprep.subr.mxu0 0.0
    %472 = vmatpush1.msra.mxu0 0.0
    %473 = vmatprep.subr.mxu0 0.0
    %474 = vmatpush1.msra.mxu0 0.0
    %475 = vmatprep.subr.mxu0 0.0
    %476 = vmatpush1.msra.mxu0 0.0
    %477 = vmatprep.subr.mxu0 0.0
    %478 = vmatpush1.msra.mxu0 0.0
    %479 = vmatprep.subr.mxu0 0.0
    %480 = vmatpush1.msra.mxu0 0.0
    %481 = vmatprep.subr.mxu0 0.0
    %482 = vmatpush1.msra.mxu0 0.0
    %483 = vmatprep.subr.mxu0 0.0
    %484 = vmatpush1.msra.mxu0 0.0
    %485 = vmatprep.subr.mxu0 0.0
    %486 = vmatpush1.msra.mxu0 0.0
    %487 = vmatprep.subr.mxu0 0.0
    %488 = vmatpush1.msra.mxu0 0.0
    %489 = vmatprep.subr.mxu0 0.0
    %490 = vmatpush1.msra.mxu0 0.0
    %491 = vmatprep.subr.mxu0 0.0
    %492 = vmatpush1.msra.mxu0 0.0
    %493 = vmatprep.mubr.f32.mxu0 0.0
    %494 = vmatmul.mubr.f32.gmra.mrb[0].mxu0 %v423
    %v495 = vpop.f32.mrb[0].mxu0
    %v496 = vadd.f32 %v419, %v495
    %v497 = vpop.f32.mrb[0].mxu0
    %498 = vdwg.mxu0
    %499 = vst [vmem:[#allocation14] sm:$0x7] %v496
    // Predicated region
    $region58: #{tpu_custom_call.1} parent=1 // pred_check
      _
    $region59: #{tpu_custom_call.1} parent=1 // pred_check_branch
      %501 = sbr.rel (0) target = $region61
    $region60: #{tpu_custom_call.1} parent=1 // pred_region
      %s503 = ssub.s32 64, 64
      %504 = vsyncadd [#allocation4], %s503
      %s506 = sshll.u32 [#allocation14], 4
      %s507 = int_to_ptr.vmem [resolvable:$true] %s506
      %509 = dma.vmem_to_hbm [thread:$0]  %s507, 64, %s7, [#allocation4]
    $region61: #{tpu_custom_call.1} parent=1 // pred_fallthru
      _
    // Predicated region
    $region62: #{tpu_custom_call.1} parent=1 // pred_check
      _
    $region63: #{tpu_custom_call.1} parent=1 // pred_check_branch
      %511 = sbr.rel (0) target = $region65
    $region64: #{tpu_custom_call.1} parent=1 // pred_region
      %512 = dma.done [#allocation4], 64
    $region65: #{tpu_custom_call.1} parent=1 // pred_fallthru
      _
    %513 = vsyncpa [#allocation3], 1
    %514 = vsyncpa [#allocation6], 1
    %515 = vsyncpa [#allocation9], 1
    %516 = vsyncpa [#allocation12], 1
    %517 = vsyncpa [#allocation4], 1

</llo_original>
